<compile_context>
chip_gen: v5e
topology: v5e:2x2
jax: 0.10.0
libtpu: 0.0.40
codegen_flags: <defaults>
</compile_context>

<pallas_src>
import functools

import jax
import jax.numpy as jnp
from jax.experimental import pallas as pl
from jax.experimental.pallas import tpu as pltpu


def _channel_attention_kernel(x_ref, w1_ref, w2_ref, out_ref,
                              sum_acc, max_acc, *, hw, tile_hw, bt):
    # x_ref:  (Bt, C, T)     input tile (any float dtype; accumulated in f32)
    # w1_ref: (hidden, C)    Conv2d(in_planes, hidden, 1) weight, squeezed
    # w2_ref: (C, hidden)    Conv2d(hidden, in_planes, 1) weight, squeezed
    # out_ref:(Bt, C)        sigmoid attention output
    # sum_acc/max_acc: (Bt, C) f32 VMEM scratch accumulators
    si = pl.program_id(1)
    last = pl.num_programs(1) - 1

    @pl.when(si == 0)
    def _init():
        sum_acc[...] = jnp.zeros_like(sum_acc)
        max_acc[...] = jnp.full_like(max_acc, -jnp.inf)

    # One load of the tile feeds both reductions (single HBM pass over x).
    x = x_ref[...].astype(jnp.float32)                       # (Bt, C, T)

    has_tail = (hw % tile_hw) != 0
    if has_tail:
        # Only the final spatial step contains out-of-range lanes; full tiles
        # take the unmasked fast path.
        @pl.when(si != last)
        def _full_tile():
            sum_acc[...] += jnp.sum(x, axis=-1)
            max_acc[...] = jnp.maximum(max_acc[...], jnp.max(x, axis=-1))

        @pl.when(si == last)
        def _tail_tile():
            lane = jax.lax.broadcasted_iota(jnp.int32, x.shape, dimension=2)
            valid = (si * tile_hw + lane) < hw
            sum_acc[...] += jnp.sum(jnp.where(valid, x, 0.0), axis=-1)
            max_acc[...] = jnp.maximum(
                max_acc[...], jnp.max(jnp.where(valid, x, -jnp.inf), axis=-1))
    else:
        sum_acc[...] += jnp.sum(x, axis=-1)                  # (Bt, C)
        max_acc[...] = jnp.maximum(max_acc[...], jnp.max(x, axis=-1))

    @pl.when(si == last)
    def _finalize():
        avg = sum_acc[...] * (1.0 / float(hw))               # (Bt, C)
        mx = max_acc[...]                                    # (Bt, C)
        # Fuse both MLP branches into one pair of matmuls.
        p = jnp.concatenate([avg, mx], axis=0)               # (2*Bt, C)
        w1 = w1_ref[...]                                     # (hidden, C)
        w2 = w2_ref[...]                                     # (C, hidden)
        h = jnp.maximum(
            jnp.dot(p, w1.T, preferred_element_type=jnp.float32), 0.0)
        o = jnp.dot(h, w2.T, preferred_element_type=jnp.float32)  # (2*Bt, C)
        out = o[:bt] + o[bt:]
        out_ref[...] = jax.nn.sigmoid(out).astype(out_ref.dtype)


def channel_attention(x, w1, w2, *, spatial_tile=None):
    """ChannelAttention forward.

    x:  (B, C, H, W)  NCHW input (f32 or bf16; reductions accumulate in f32)
    w1: (hidden, C)   first 1x1-conv weight (squeezed)
    w2: (C, hidden)   second 1x1-conv weight (squeezed)
    Returns sigmoid attention map of shape (B, C, 1, 1) (matches PyTorch).
    """
    B, C, H, W = x.shape
    HW = H * W
    x_flat = x.reshape(B, C, HW)
    itemsize = x_flat.dtype.itemsize

    # Batch tile: a multiple of 8 or the full batch (output block rule).
    Bt = 8 if (B % 8 == 0 and B >= 8) else B
    num_b = B // Bt

    # Spatial tile: multiple of 128, sized so one block is <= ~4 MiB (keeps
    # double-buffered inputs well under v7x's scoped VMEM), or the full
    # spatial extent if that is smaller.
    if spatial_tile is None:
        budget_bytes = 4 * 1024 * 1024
        t = max(((budget_bytes // (Bt * C * itemsize)) // 128) * 128, 128)
    else:
        t = max((spatial_tile // 128) * 128, 128)
    if t >= HW:
        T, num_s = HW, 1
    else:
        T, num_s = t, pl.cdiv(HW, t)

    block_bytes = Bt * C * T * itemsize
    vmem_limit = int(min(max(4 * block_bytes + (4 << 20), 16 << 20), 64 << 20))

    kernel = functools.partial(
        _channel_attention_kernel, hw=HW, tile_hw=T, bt=Bt)

    out = pl.pallas_call(
        kernel,
        out_shape=jax.ShapeDtypeStruct((B, C), x.dtype),
        grid_spec=pltpu.PrefetchScalarGridSpec(
            num_scalar_prefetch=0,
            grid=(num_b, num_s),
            in_specs=[
                # x tiles stream through VMEM, double-buffered by Pallas.
                pl.BlockSpec((Bt, C, T), lambda bi, si: (bi, 0, si)),
                # Weights: constant index_map -> resident across all steps.
                pl.BlockSpec(w1.shape, lambda bi, si: (0, 0)),
                pl.BlockSpec(w2.shape, lambda bi, si: (0, 0)),
            ],
            out_specs=pl.BlockSpec((Bt, C), lambda bi, si: (bi, 0)),
            scratch_shapes=[
                pltpu.VMEM((Bt, C), jnp.float32),   # running sum
                pltpu.VMEM((Bt, C), jnp.float32),   # running max
            ],
        ),
        compiler_params=pltpu.CompilerParams(
            dimension_semantics=("parallel", "arbitrary"),
            vmem_limit_bytes=vmem_limit,
        ),
    )(x_flat, w1, w2)
    return out.reshape(B, C, 1, 1)


def channel_attention_ref(x, w1, w2):
    """Pure-JAX reference mirroring the PyTorch forward."""
    xf = x.astype(jnp.float32)
    avg = jnp.mean(xf, axis=(2, 3))          # (B, C)
    mx = jnp.max(xf, axis=(2, 3))            # (B, C)

    def mlp(p):
        h = jnp.maximum(p @ w1.T, 0.0)
        return h @ w2.T

    out = jax.nn.sigmoid(mlp(avg) + mlp(mx))
    return out.reshape(*out.shape, 1, 1).astype(x.dtype)


if __name__ == "__main__":
    # Module config: in_planes=16, ratio=8 -> hidden_planes = 2
    B, C, H, W = 2, 16, 16, 16
    ratio = 8
    hidden = max(C // ratio, 1)

    key = jax.random.PRNGKey(0)
    kx, k1, k2, kx2 = jax.random.split(key, 4)

    x = jax.random.normal(kx, (B, C, H, W), dtype=jnp.float32)
    # Conv2d(C, hidden, 1, bias=False).weight is (hidden, C, 1, 1); store the
    # squeezed (hidden, C) matrix. Deterministic synthetic init.
    w1 = jax.random.normal(k1, (hidden, C), dtype=jnp.float32) * (1.0 / jnp.sqrt(C))
    w2 = jax.random.normal(k2, (C, hidden), dtype=jnp.float32) * (1.0 / jnp.sqrt(hidden))

    # Case 1: default tiling (spatial fits one block).
    out = jax.block_until_ready(channel_attention(x, w1, w2))
    ref = channel_attention_ref(x, w1, w2)
    assert out.shape == (B, C, 1, 1), out.shape
    assert jnp.allclose(out, ref, atol=1e-5, rtol=1e-5), (
        float(jnp.max(jnp.abs(out - ref))))

    # Case 2: force multi-step spatial reduction (accumulator path).
    out2 = jax.block_until_ready(channel_attention(x, w1, w2, spatial_tile=128))
    assert jnp.allclose(out2, ref, atol=1e-5, rtol=1e-5), (
        float(jnp.max(jnp.abs(out2 - ref))))

    # Case 3: H*W not a multiple of the tile -> masked tail tile (pl.when path).
    x3 = jax.random.normal(kx2, (B, C, 20, 20), dtype=jnp.float32)
    out3 = jax.block_until_ready(channel_attention(x3, w1, w2, spatial_tile=128))
    ref3 = channel_attention_ref(x3, w1, w2)
    assert jnp.allclose(out3, ref3, atol=1e-5, rtol=1e-5), (
        float(jnp.max(jnp.abs(out3 - ref3))))

    print("KERNEL_OK")
</pallas_src>

<mosaic_0001>
module attributes {stable_mosaic.version = 11 : i64} {
  func.func @_channel_attention_kernel(%arg0: i32, %arg1: i32, %arg2: memref<2x16x256xf32, #tpu.memory_space<vmem>>, %arg3: memref<2x16xf32, #tpu.memory_space<vmem>>, %arg4: memref<16x2xf32, #tpu.memory_space<vmem>>, %arg5: memref<2x16xf32, #tpu.memory_space<vmem>>, %arg6: memref<2x16xf32, #tpu.memory_space<vmem>>, %arg7: memref<2x16xf32, #tpu.memory_space<vmem>>) attributes {dimension_semantics = [#tpu.dimension_semantics<parallel>, #tpu.dimension_semantics<arbitrary>], iteration_bounds = array<i64: 1, 1>, scalar_prefetch = 0 : i64, scratch_operands = 2 : i64, tpu.core_type = #tpu.core_type<tc>, window_params = [{transform_indices = @transform_0, window_bounds = array<i64: 2, 16, 256>}, {pipeline_mode = #tpu.pipeline_mode<synchronous>, transform_indices = @transform_1, window_bounds = array<i64: 2, 16>}, {pipeline_mode = #tpu.pipeline_mode<synchronous>, transform_indices = @transform_2, window_bounds = array<i64: 16, 2>}, {transform_indices = @transform_3, window_bounds = array<i64: 2, 16>}]} {
    %c0_i32 = arith.constant 0 : i32
    %0 = arith.cmpi eq, %arg1, %c0_i32 : i32
    %1 = arith.extui %0 : i1 to i32
    %c0_i32_0 = arith.constant 0 : i32
    %2 = arith.cmpi ne, %1, %c0_i32_0 : i32
    scf.if %2 {
      %cst_14 = arith.constant 0.000000e+00 : f32
      %15 = vector.broadcast %cst_14 : f32 to vector<2x16xf32>
      %c0_15 = arith.constant 0 : index
      %c0_16 = arith.constant 0 : index
      %16 = vector.load %arg6[%c0_15, %c0_16] : memref<2x16xf32, #tpu.memory_space<vmem>>, vector<2x16xf32>
      tpu.vector_store %arg6[%c0_15, %c0_16], %15 {strides = array<i32>} : memref<2x16xf32, #tpu.memory_space<vmem>>, vector<2x16xf32>,
      %cst_17 = arith.constant 0xFF800000 : f32
      %17 = vector.broadcast %cst_17 : f32 to vector<2x16xf32>
      %c0_18 = arith.constant 0 : index
      %c0_19 = arith.constant 0 : index
      %18 = vector.load %arg7[%c0_18, %c0_19] : memref<2x16xf32, #tpu.memory_space<vmem>>, vector<2x16xf32>
      tpu.vector_store %arg7[%c0_18, %c0_19], %17 {strides = array<i32>} : memref<2x16xf32, #tpu.memory_space<vmem>>, vector<2x16xf32>,
    } else {
    }
    %c0 = arith.constant 0 : index
    %c0_1 = arith.constant 0 : index
    %c0_2 = arith.constant 0 : index
    %3 = vector.load %arg2[%c0, %c0_1, %c0_2] : memref<2x16x256xf32, #tpu.memory_space<vmem>>, vector<2x16x256xf32>
    %c0_3 = arith.constant 0 : index
    %c0_4 = arith.constant 0 : index
    %4 = vector.load %arg6[%c0_3, %c0_4] : memref<2x16xf32, #tpu.memory_space<vmem>>, vector<2x16xf32>
    %cst = arith.constant dense<0.000000e+00> : vector<2x16xf32>
    %5 = vector.multi_reduction <add>, %3, %cst [2] : vector<2x16x256xf32> to vector<2x16xf32>
    %6 = arith.addf %4, %5 : vector<2x16xf32>
    %c0_5 = arith.constant 0 : index
    %c0_6 = arith.constant 0 : index
    %7 = vector.load %arg6[%c0_5, %c0_6] : memref<2x16xf32, #tpu.memory_space<vmem>>, vector<2x16xf32>
    tpu.vector_store %arg6[%c0_5, %c0_6], %6 {strides = array<i32>} : memref<2x16xf32, #tpu.memory_space<vmem>>, vector<2x16xf32>,
    %c0_7 = arith.constant 0 : index
    %c0_8 = arith.constant 0 : index
    %8 = vector.load %arg7[%c0_7, %c0_8] : memref<2x16xf32, #tpu.memory_space<vmem>>, vector<2x16xf32>
    %cst_9 = arith.constant dense<0xFF800000> : vector<2x16xf32>
    %9 = vector.multi_reduction <maximumf>, %3, %cst_9 [2] : vector<2x16x256xf32> to vector<2x16xf32>
    %10 = arith.maximumf %8, %9 : vector<2x16xf32>
    %c0_10 = arith.constant 0 : index
    %c0_11 = arith.constant 0 : index
    %11 = vector.load %arg7[%c0_10, %c0_11] : memref<2x16xf32, #tpu.memory_space<vmem>>, vector<2x16xf32>
    tpu.vector_store %arg7[%c0_10, %c0_11], %10 {strides = array<i32>} : memref<2x16xf32, #tpu.memory_space<vmem>>, vector<2x16xf32>,
    %c0_i32_12 = arith.constant 0 : i32
    %12 = arith.cmpi eq, %arg1, %c0_i32_12 : i32
    %13 = arith.extui %12 : i1 to i32
    %c0_i32_13 = arith.constant 0 : i32
    %14 = arith.cmpi ne, %13, %c0_i32_13 : i32
    scf.if %14 {
      %c0_14 = arith.constant 0 : index
      %c0_15 = arith.constant 0 : index
      %15 = vector.load %arg6[%c0_14, %c0_15] : memref<2x16xf32, #tpu.memory_space<vmem>>, vector<2x16xf32>
      %cst_16 = arith.constant 3.906250e-03 : f32
      %16 = vector.broadcast %cst_16 : f32 to vector<2x16xf32>
      %17 = arith.mulf %15, %16 : vector<2x16xf32>
      %c0_17 = arith.constant 0 : index
      %c0_18 = arith.constant 0 : index
      %18 = vector.load %arg7[%c0_17, %c0_18] : memref<2x16xf32, #tpu.memory_space<vmem>>, vector<2x16xf32>
      %19 = tpu.concatenate %17, %18 in 0 : vector<2x16xf32>, vector<2x16xf32> -> vector<4x16xf32>
      %c0_19 = arith.constant 0 : index
      %c0_20 = arith.constant 0 : index
      %20 = vector.load %arg3[%c0_19, %c0_20] : memref<2x16xf32, #tpu.memory_space<vmem>>, vector<2x16xf32>
      %c0_21 = arith.constant 0 : index
      %c0_22 = arith.constant 0 : index
      %21 = vector.load %arg4[%c0_21, %c0_22] : memref<16x2xf32, #tpu.memory_space<vmem>>, vector<16x2xf32>
      %22 = tpu.transpose %20, [1, 0] : vector<2x16xf32> -> vector<16x2xf32>
      %cst_23 = arith.constant dense<0.000000e+00> : vector<4x2xf32>
      %23 = tpu.matmul %19, %22, %cst_23 {dimension_numbers = #tpu.dot_dimension_numbers<[1], [0], [0], [1], [0, 0, 1, 1], [], []>} : vector<4x16xf32>, vector<16x2xf32>, vector<4x2xf32> -> vector<4x2xf32>
      %cst_24 = arith.constant 0.000000e+00 : f32
      %24 = vector.broadcast %cst_24 : f32 to vector<4x2xf32>
      %25 = arith.maximumf %23, %24 : vector<4x2xf32>
      %26 = tpu.transpose %21, [1, 0] : vector<16x2xf32> -> vector<2x16xf32>
      %cst_25 = arith.constant dense<0.000000e+00> : vector<4x16xf32>
      %27 = tpu.matmul %25, %26, %cst_25 {dimension_numbers = #tpu.dot_dimension_numbers<[1], [0], [0], [1], [0, 0, 1, 1], [], []>} : vector<4x2xf32>, vector<2x16xf32>, vector<4x16xf32> -> vector<4x16xf32>
      %28 = vector.extract_strided_slice %27 {offsets = [0, 0], sizes = [2, 16], strides = [1, 1]} : vector<4x16xf32> to vector<2x16xf32>
      %29 = vector.extract_strided_slice %27 {offsets = [2, 0], sizes = [2, 16], strides = [1, 1]} : vector<4x16xf32> to vector<2x16xf32>
      %30 = arith.addf %28, %29 : vector<2x16xf32>
      %31 = arith.negf %30 : vector<2x16xf32>
      %32 = math.exp %31 : vector<2x16xf32>
      %cst_26 = arith.constant 1.000000e+00 : f32
      %33 = vector.broadcast %cst_26 : f32 to vector<2x16xf32>
      %34 = arith.addf %33, %32 : vector<2x16xf32>
      %35 = arith.divf %33, %34 : vector<2x16xf32>
      %c0_27 = arith.constant 0 : index
      %c0_28 = arith.constant 0 : index
      %36 = vector.load %arg5[%c0_27, %c0_28] : memref<2x16xf32, #tpu.memory_space<vmem>>, vector<2x16xf32>
      tpu.vector_store %arg5[%c0_27, %c0_28], %35 {strides = array<i32>} : memref<2x16xf32, #tpu.memory_space<vmem>>, vector<2x16xf32>,
    } else {
    }
    return
  }
  func.func @transform_0(%arg0: i32, %arg1: i32) -> (i32, i32, i32) {
    %c0_i32 = arith.constant 0 : i32
    %c0_i32_0 = arith.constant 0 : i32
    return %arg0, %c0_i32, %arg1 : i32, i32, i32
  }
  func.func @transform_1(%arg0: i32, %arg1: i32) -> (i32, i32) {
    %c0_i32 = arith.constant 0 : i32
    %c0_i32_0 = arith.constant 0 : i32
    %c0_i32_1 = arith.constant 0 : i32
    return %c0_i32, %c0_i32_0 : i32, i32
  }
  func.func @transform_2(%arg0: i32, %arg1: i32) -> (i32, i32) {
    %c0_i32 = arith.constant 0 : i32
    %c0_i32_0 = arith.constant 0 : i32
    %c0_i32_1 = arith.constant 0 : i32
    return %c0_i32, %c0_i32_0 : i32, i32
  }
  func.func @transform_3(%arg0: i32, %arg1: i32) -> (i32, i32) {
    %c0_i32 = arith.constant 0 : i32
    %c0_i32_0 = arith.constant 0 : i32
    return %arg0, %c0_i32 : i32, i32
  }
}

</mosaic_0001>

<llo_original>
// kernel: tpu_custom_call.1
$region0: #{tpu_custom_call.1}
  #allocation0 [shape = 'u32[]', space=smem, size = 0x4, offset = 0x4, fixed_abs, tag = 'smem constant byte address 0x4 - core index']
  #allocation1 [shape = 'u32[72,128]{1,0:T(1,128)}', space=vmem, size = 0x9000, scoped, tag = 'internal scratch']
  #allocation2 [shape = 'f32[2,16]{1,0:T(2,128)}', space=vmem, size = 0x400, scoped, tag = 'scratch operand']
  #allocation3 [shape = 'f32[2,16]{1,0:T(2,128)}', space=vmem, size = 0x400, scoped, tag = 'scratch operand']
  %s0 = inlined_call_operand.hbm [shape: f32[2,16,256], index: 0, kind: input, shape index: {}]
  %s1 = inlined_call_operand.vmem [shape: f32[2,16], index: 1, kind: input, shape index: {}]
  %s2 = inlined_call_operand.vmem [shape: f32[16,2], index: 2, kind: input, shape index: {}]
  %s3 = inlined_call_operand.hbm [shape: f32[2,16], index: 3, kind: output, shape index: {}]
  %s4 = sld [smem:[#allocation0]]
  $region34: #{tpu_custom_call.1} parent=0
    _
  %s6 = ssub.s32 1, %s4
  %s7 = scalar_select 0, %s6, %s4
  $region1: #{tpu_custom_call.1} parent=0
    #allocation4 [shape = 'u8[32768]{0}', space=vmem, size = 0x8000, scoped, tag = 'input window, operand 0, single buffered']
    #allocation5 [shape = 's32[1]{0}', space=sflag, size = 0x4, scoped, tag = 'scoped memory for tpu_custom_call.1']
    #allocation6 [shape = 's32[1]{0}', space=sflag, size = 0x4, scoped, tag = 'scoped memory for tpu_custom_call.1']
    #allocation7 [shape = 'u8[1024]{0}', space=vmem, size = 0x400, scoped, tag = 'output window, operand 0, single buffered']
    %8 = vsyncpa [#allocation5], 0
    %9 = vsyncpa [#allocation6], 0
    // Predicated region
    $region2: #{tpu_custom_call.1} parent=1 // pred_check
      _
    $region3: #{tpu_custom_call.1} parent=1 // pred_check_branch
      %11 = sbr.rel (0) target = $region5
    $region4: #{tpu_custom_call.1} parent=1 // pred_region
      %13 = vsyncadd [#allocation5], 0
      %s14 = sshll.u32 %s0, 4
      %s15 = int_to_ptr.hbm [resolvable:$true] %s14
      %s16 = sshll.u32 [#allocation4], 4
      %s17 = int_to_ptr.vmem [resolvable:$true] %s16
      %22 = dma.hbm_to_vmem [thread:$0]  %s15, 1024, %s17, [#allocation5], 256, 256, 16
    $region5: #{tpu_custom_call.1} parent=1 // pred_fallthru
      _
    // Predicated region
    $region6: #{tpu_custom_call.1} parent=1 // pred_check
      _
    $region7: #{tpu_custom_call.1} parent=1 // pred_check_branch
      %24 = sbr.rel (0) target = $region9
    $region8: #{tpu_custom_call.1} parent=1 // pred_region
      _
    $region9: #{tpu_custom_call.1} parent=1 // pred_fallthru
      _
    // Predicated region
    $region10: #{tpu_custom_call.1} parent=1 // pred_check
      _
    $region11: #{tpu_custom_call.1} parent=1 // pred_check_branch
      %26 = sbr.rel (0) target = $region13
    $region12: #{tpu_custom_call.1} parent=1 // pred_region
      _
    $region13: #{tpu_custom_call.1} parent=1 // pred_fallthru
      _
    // Predicated region
    $region14: #{tpu_custom_call.1} parent=1 // pred_check
      _
    $region15: #{tpu_custom_call.1} parent=1 // pred_check_branch
      %28 = sbr.rel (0) target = $region17
    $region16: #{tpu_custom_call.1} parent=1 // pred_region
      %30 = dma.done [#allocation5], 1024
    $region17: #{tpu_custom_call.1} parent=1 // pred_fallthru
      _
    %p31 = scmp.eq.s32.totalorder 0, 0
    // Predicated region
    $region18: #{tpu_custom_call.1} parent=1 // pred_check
      %p32 = pneg %p31
    $region19: #{tpu_custom_call.1} parent=1 // pred_check_branch
      %34 = sbr.rel (%p32) target = $region21
    $region20: #{tpu_custom_call.1} parent=1 // pred_region
      %vm35 = vcmask 123904
      %36 = vst.msk [vmem:[#allocation2] sm:$0x3] %vm35, 0.0
      %37 = vst.msk [vmem:[#allocation3] sm:$0x3] %vm35, -inf
    $region21: #{tpu_custom_call.1} parent=1 // pred_fallthru
      _
    %v38 = vld [vmem:[#allocation4] sm:$0xff]
    %v39 = vld [vmem:[#allocation4 + $0x8] sm:$0xff]
    %v40 = vld [vmem:[#allocation4 + $0x10] sm:$0xff]
    %v41 = vld [vmem:[#allocation4 + $0x18] sm:$0xff]
    %v42 = vld [vmem:[#allocation4 + $0x20] sm:$0xff]
    %v43 = vld [vmem:[#allocation4 + $0x28] sm:$0xff]
    %v44 = vld [vmem:[#allocation4 + $0x30] sm:$0xff]
    %v45 = vld [vmem:[#allocation4 + $0x38] sm:$0xff]
    %v46 = vld [vmem:[#allocation2] sm:$0x3]
    %v47 = vadd.f32 %v38, %v39
    %48 = vadd.xlane.f32.xlu0 %v47
    %v49 = vpop.xlane.xlu0 %48
    %v50 = vadd.f32 %v40, %v41
    %51 = vadd.xlane.f32.xlu0 %v50
    %v52 = vpop.xlane.xlu0 %51
    %v53 = vadd.f32 %v42, %v43
    %54 = vadd.xlane.f32.xlu0 %v53
    %v55 = vpop.xlane.xlu0 %54
    %v56 = vadd.f32 %v44, %v45
    %57 = vadd.xlane.f32.xlu0 %v56
    %v58 = vpop.xlane.xlu0 %57
    %v63 = vlaneseq
    %v64 = vand.u32 %v63, 127
    %v65 = vperm.slane %v49, %v64
    %v66 = vadd.s32 %v64, 4294967288
    %v67 = vperm.slane %v52, %v66
    %vm68 = vcmask 130112
    %v69 = vsel %vm68, %v67, %v65
    %v70 = vperm.slane %v55, %v64
    %v71 = vperm.slane %v58, %v66
    %v72 = vsel %vm68, %v71, %v70
    %vm73 = vcmask 1041409
    %v74 = vsel %vm73, %v72, %v69
    %v76 = vadd.f32 %v46, %v74
    %vm77 = vcmask 123904
    %78 = vst.msk [vmem:[#allocation2] sm:$0x3] %vm77, %v76
    %v79 = vld [vmem:[#allocation3] sm:$0x3]
    %v80 = vmax.f32 %v38, %v39
    %81 = vmax.xlane.f32.xlu0 %v80
    %v82 = vpop.xlane.xlu0 %81
    %v83 = vmax.f32 %v40, %v41
    %84 = vmax.xlane.f32.xlu0 %v83
    %v85 = vpop.xlane.xlu0 %84
    %v86 = vmax.f32 %v42, %v43
    %87 = vmax.xlane.f32.xlu0 %v86
    %v88 = vpop.xlane.xlu0 %87
    %v89 = vmax.f32 %v44, %v45
    %90 = vmax.xlane.f32.xlu0 %v89
    %v91 = vpop.xlane.xlu0 %90
    %v96 = vperm.slane %v82, %v64
    %v97 = vperm.slane %v85, %v66
    %v98 = vsel %vm68, %v97, %v96
    %v99 = vperm.slane %v88, %v64
    %v100 = vperm.slane %v91, %v66
    %v101 = vsel %vm68, %v100, %v99
    %v102 = vsel %vm73, %v101, %v98
    %v104 = vmax.f32 %v79, %v102
    %105 = vst.msk [vmem:[#allocation3] sm:$0x3] %vm77, %v104
    // Predicated region
    $region22: #{tpu_custom_call.1} parent=1 // pred_check
      %p106 = pneg %p31
    $region23: #{tpu_custom_call.1} parent=1 // pred_check_branch
      %108 = sbr.rel (%p106) target = $region25
    $region24: #{tpu_custom_call.1} parent=1 // pred_region
      %v109 = vld [vmem:[#allocation2] sm:$0x3]
      %v110 = vmul.f32 %v109, 0.00390625
      %v111 = vld [vmem:[#allocation3] sm:$0x3]
      %v113 = vrot.slane %v111, 6
      %vm115 = vcmask 1041408
      %v116 = vsel %vm115, %v110, %v113
      %v117 = vld [vmem:[%s1] sm:$0x3]
      %v118 = vld [vmem:[%s2] sm:$0xff]
      %v119 = vld [vmem:[%s2 + $0x8] sm:$0xff]
      %vm120 = vcmask 130048
      %v122 = vsel %vm120, %v116, 0
      %v125 = vsel %vm120, %v117, 0
      %127 = vmatpush.xpose.msra.mxu0 0.0
      %128 = vmatpush.xpose.msra.mxu0 0.0
      %129 = vmatpush.xpose.msra.mxu0 0.0
      %130 = vmatpush.xpose.msra.mxu0 0.0
      %131 = vmatpush.xpose.msra.mxu0 0.0
      %132 = vmatpush.xpose.msra.mxu0 0.0
      %133 = vmatpush.xpose.msra.mxu0 0.0
      %134 = vmatpush.xpose.msra.mxu0 0.0
      %135 = vmatpush.xpose.msra.mxu0 0.0
      %136 = vmatpush.xpose.msra.mxu0 0.0
      %137 = vmatpush.xpose.msra.mxu0 0.0
      %138 = vmatpush.xpose.msra.mxu0 0.0
      %139 = vmatpush.xpose.msra.mxu0 0.0
      %140 = vmatpush.xpose.msra.mxu0 0.0
      %141 = vmatpush.xpose.msra.mxu0 0.0
      %142 = vmatpush.xpose.msra.mxu0 %v125
      %143 = vmatmul.f32.gmra.mxu0 %v122
      %v144 = vpop.f32.mrf.mxu0
      %v145 = vadd.f32 0.0, %v144
      %146 = vdwg.mxu0
      %v147 = vmax.f32 %v145, 0.0
      %vm148 = vcmask 15360
      %v150 = vsel %vm148, %v147, 0
      %v153 = vsel %vm148, %v118, 0
      %v156 = vsel %vm148, %v119, 0
      %158 = vmatpush.xpose.msra.mxu0 0.0
      %159 = vmatpush.xpose.msra.mxu0 0.0
      %160 = vmatpush.xpose.msra.mxu0 0.0
      %161 = vmatpush.xpose.msra.mxu0 0.0
      %162 = vmatpush.xpose.msra.mxu0 0.0
      %163 = vmatpush.xpose.msra.mxu0 0.0
      %164 = vmatpush.xpose.msra.mxu0 0.0
      %165 = vmatpush.xpose.msra.mxu0 0.0
      %166 = vmatpush.xpose.msra.mxu0 0.0
      %167 = vmatpush.xpose.msra.mxu0 0.0
      %168 = vmatpush.xpose.msra.mxu0 0.0
      %169 = vmatpush.xpose.msra.mxu0 0.0
      %170 = vmatpush.xpose.msra.mxu0 0.0
      %171 = vmatpush.xpose.msra.mxu0 0.0
      %172 = vmatpush.xpose.msra.mxu0 %v156
      %173 = vmatpush.xpose.msra.mxu0 %v153
      %174 = vmatmul.f32.gmra.mxu0 %v150
      %v175 = vpop.f32.mrf.mxu0
      %v176 = vadd.f32 0.0, %v175
      %177 = vdwg.mxu0
      %v179 = vrot.slane %v176, 2
      %v181 = vadd.f32 %v176, %v179
      %v182 = vxor.u32 %v181, 2147483648
      %v183 = vmul.f32 %v182, 1.442695
      %v184 = vpow.pop %v183
      %v185 = vadd.f32 %v184, 1.0
      %v186 = vrcp.pop %v185
      %v187 = vmul.f32 %v185, %v186
      %v188 = vsub.f32 1.0, %v187
      %v189 = vmul.f32 %v186, %v188
      %v190 = vadd.f32 %v186, %v189
      %vm191 = vweird.f32 %v185
      %vm192 = vweird.f32 %v186
      %vm193 = vmor %vm191, %vm192
      %v194 = vsel %vm193, %v186, %v190
      %v195 = vand.u32 2147483647, %v185
      %vm196 = vcmp.eq.f32.partialorder %v195, 8.507059e+37
      %v197 = vand.u32 %v185, 2147483648
      %v198 = vor.u32 1.1754944e-38, %v197
      %v199 = vsel %vm196, %v198, %v194
      %v200 = vmul.f32 1.0, %v199
      %201 = vst.msk [vmem:[#allocation7] sm:$0x3] %vm77, %v200
    $region25: #{tpu_custom_call.1} parent=1 // pred_fallthru
      _
    // Predicated region
    $region26: #{tpu_custom_call.1} parent=1 // pred_check
      _
    $region27: #{tpu_custom_call.1} parent=1 // pred_check_branch
      %203 = sbr.rel (0) target = $region29
    $region28: #{tpu_custom_call.1} parent=1 // pred_region
      %205 = vsyncadd [#allocation6], 0
      %s207 = sshll.u32 [#allocation7], 4
      %s208 = int_to_ptr.vmem [resolvable:$true] %s207
      %s209 = sshll.u32 %s3, 4
      %s210 = int_to_ptr.hbm [resolvable:$true] %s209
      %212 = dma.vmem_to_hbm [thread:$0]  %s208, 32, %s210, [#allocation6]
    $region29: #{tpu_custom_call.1} parent=1 // pred_fallthru
      _
    // Predicated region
    $region30: #{tpu_custom_call.1} parent=1 // pred_check
      _
    $region31: #{tpu_custom_call.1} parent=1 // pred_check_branch
      %214 = sbr.rel (0) target = $region33
    $region32: #{tpu_custom_call.1} parent=1 // pred_region
      %216 = dma.done [#allocation6], 32
    $region33: #{tpu_custom_call.1} parent=1 // pred_fallthru
      _
    %217 = vsyncpa [#allocation5], 1
    %218 = vsyncpa [#allocation6], 1

</llo_original>
